<compile_context>
chip_gen: v5e
topology: v5e:2x2
jax: 0.10.0
libtpu: 0.0.40
codegen_flags: <defaults>
</compile_context>

<pallas_src>
import jax
import jax.numpy as jnp
from jax.experimental import pallas as pl
from jax.experimental.pallas import tpu as pltpu

_LANE = 128
_MAX_COLS = 4096
_TARGET_BLOCK_BYTES = 4 * 1024 * 1024  # ~4 MiB tile; 4x (dbl-buffered in+out) = 16 MiB


def _plus_one_kernel(x_ref, o_ref):
    o_ref[...] = x_ref[...] + jnp.asarray(1, dtype=x_ref.dtype)


def plus_one(x: jax.Array) -> jax.Array:
    """Elementwise x + 1 via a lane-dense Pallas TPU kernel."""
    orig_shape = x.shape
    dtype = x.dtype

    # Edge cases where a custom kernel buys nothing (or is ill-defined).
    if x.size == 0 or dtype == jnp.bool_:
        return x + 1

    n = x.size
    itemsize = jnp.dtype(dtype).itemsize

    # Lane-dense flatten: (rows, cols) with cols a large multiple of 128.
    flat = x.reshape(-1)
    pad = (-n) % _LANE
    if pad:
        # Only hit when total element count is not a multiple of 128.
        flat = jnp.pad(flat, (0, pad))
    total = flat.size

    cols = _LANE
    c = _LANE
    while c <= _MAX_COLS:
        if total % c == 0:
            cols = c
        c *= 2
    rows = total // cols
    x2 = flat.reshape(rows, cols)

    # Size blocks by bytes, not a fixed row count.
    max_block_rows = max(1, _TARGET_BLOCK_BYTES // (cols * itemsize))
    if rows <= max_block_rows:
        block_rows = rows                      # single full-extent block
    else:
        block_rows = max(8, (max_block_rows // 8) * 8)  # (8,128)-aligned tile

    grid = (pl.cdiv(rows, block_rows),)

    out = pl.pallas_call(
        _plus_one_kernel,
        out_shape=jax.ShapeDtypeStruct((rows, cols), dtype),
        grid_spec=pltpu.PrefetchScalarGridSpec(
            num_scalar_prefetch=0,
            grid=grid,
            in_specs=[pl.BlockSpec((block_rows, cols), lambda i: (i, 0))],
            out_specs=pl.BlockSpec((block_rows, cols), lambda i: (i, 0)),
        ),
        compiler_params=pltpu.CompilerParams(
            dimension_semantics=("parallel",),
            vmem_limit_bytes=32 * 1024 * 1024,  # safe on v5e/v6e/v7x
        ),
        cost_estimate=pl.CostEstimate(
            flops=n, transcendentals=0, bytes_accessed=2 * n * itemsize
        ),
    )(x2)

    out_flat = out.reshape(-1)
    if pad:
        out_flat = out_flat[:n]
    return out_flat.reshape(orig_shape)


if __name__ == "__main__":
    key = jax.random.PRNGKey(0)

    # Small NCHW-style input consistent with typical activation usage.
    x = jax.random.normal(key, (2, 4, 16, 16), dtype=jnp.float32)
    y = plus_one(x)
    jax.block_until_ready(y)
    assert y.shape == x.shape and y.dtype == x.dtype
    assert jnp.allclose(y, x + 1.0), "mismatch vs reference (f32 NCHW)"

    # Non-128-divisible element count exercises the padded path.
    x2 = jax.random.normal(jax.random.PRNGKey(1), (3, 5, 7), dtype=jnp.float32)
    y2 = plus_one(x2)
    jax.block_until_ready(y2)
    assert y2.shape == x2.shape and y2.dtype == x2.dtype
    assert jnp.allclose(y2, x2 + 1.0), "mismatch vs reference (ragged)"

    print("KERNEL_OK")
</pallas_src>

<mosaic_0001>
module attributes {stable_mosaic.version = 11 : i64} {
  func.func @_plus_one_kernel(%arg0: i32, %arg1: memref<1x2048xf32, #tpu.memory_space<vmem>>, %arg2: memref<1x2048xf32, #tpu.memory_space<vmem>>) attributes {dimension_semantics = [#tpu.dimension_semantics<parallel>], iteration_bounds = array<i64: 1>, scalar_prefetch = 0 : i64, scratch_operands = 0 : i64, tpu.core_type = #tpu.core_type<tc>, window_params = [{transform_indices = @transform_0, window_bounds = array<i64: 1, 2048>}, {transform_indices = @transform_1, window_bounds = array<i64: 1, 2048>}]} {
    %c0 = arith.constant 0 : index
    %c0_0 = arith.constant 0 : index
    %0 = vector.load %arg1[%c0, %c0_0] : memref<1x2048xf32, #tpu.memory_space<vmem>>, vector<1x2048xf32>
    %cst = arith.constant 1.000000e+00 : f32
    %1 = vector.broadcast %cst : f32 to vector<1x2048xf32>
    %2 = arith.addf %0, %1 : vector<1x2048xf32>
    %c0_1 = arith.constant 0 : index
    %c0_2 = arith.constant 0 : index
    %3 = vector.load %arg2[%c0_1, %c0_2] : memref<1x2048xf32, #tpu.memory_space<vmem>>, vector<1x2048xf32>
    tpu.vector_store %arg2[%c0_1, %c0_2], %2 {strides = array<i32>} : memref<1x2048xf32, #tpu.memory_space<vmem>>, vector<1x2048xf32>,
    return
  }
  func.func @transform_0(%arg0: i32) -> (i32, i32) {
    %c0_i32 = arith.constant 0 : i32
    %c0_i32_0 = arith.constant 0 : i32
    return %arg0, %c0_i32 : i32, i32
  }
  func.func @transform_1(%arg0: i32) -> (i32, i32) {
    %c0_i32 = arith.constant 0 : i32
    %c0_i32_0 = arith.constant 0 : i32
    return %arg0, %c0_i32 : i32, i32
  }
}

</mosaic_0001>

<llo_original>
// kernel: tpu_custom_call.1
$region0: #{tpu_custom_call.1}
  #allocation0 [shape = 'u32[]', space=smem, size = 0x4, offset = 0x4, fixed_abs, tag = 'smem constant byte address 0x4 - core index']
  #allocation1 [shape = 'u32[72,128]{1,0:T(1,128)}', space=vmem, size = 0x9000, scoped, tag = 'internal scratch']
  %s0 = inlined_call_operand.hbm [shape: f32[1,2048], index: 0, kind: input, shape index: {}]
  %s1 = inlined_call_operand.hbm [shape: f32[1,2048], index: 1, kind: output, shape index: {}]
  %s2 = sld [smem:[#allocation0]]
  $region18: #{tpu_custom_call.1} parent=0
    _
  %s4 = ssub.s32 1, %s2
  %s5 = scalar_select 0, %s4, %s2
  $region1: #{tpu_custom_call.1} parent=0
    #allocation2 [shape = 'u8[8192]{0}', space=vmem, size = 0x2000, scoped, tag = 'input window, operand 0, single buffered']
    #allocation3 [shape = 's32[1]{0}', space=sflag, size = 0x4, scoped, tag = 'scoped memory for tpu_custom_call.1']
    #allocation4 [shape = 's32[1]{0}', space=sflag, size = 0x4, scoped, tag = 'scoped memory for tpu_custom_call.1']
    #allocation5 [shape = 'u8[8192]{0}', space=vmem, size = 0x2000, scoped, tag = 'output window, operand 0, single buffered']
    %6 = vsyncpa [#allocation3], 0
    %7 = vsyncpa [#allocation4], 0
    // Predicated region
    $region2: #{tpu_custom_call.1} parent=1 // pred_check
      _
    $region3: #{tpu_custom_call.1} parent=1 // pred_check_branch
      %9 = sbr.rel (0) target = $region5
    $region4: #{tpu_custom_call.1} parent=1 // pred_region
      %11 = vsyncadd [#allocation3], 0
      %s13 = sshll.u32 %s0, 4
      %s14 = int_to_ptr.hbm [resolvable:$true] %s13
      %s15 = sshll.u32 [#allocation2], 4
      %s16 = int_to_ptr.vmem [resolvable:$true] %s15
      %18 = dma.hbm_to_vmem [thread:$0]  %s14, 256, %s16, [#allocation3]
    $region5: #{tpu_custom_call.1} parent=1 // pred_fallthru
      _
    // Predicated region
    $region6: #{tpu_custom_call.1} parent=1 // pred_check
      _
    $region7: #{tpu_custom_call.1} parent=1 // pred_check_branch
      %20 = sbr.rel (0) target = $region9
    $region8: #{tpu_custom_call.1} parent=1 // pred_region
      %22 = dma.done [#allocation3], 256
    $region9: #{tpu_custom_call.1} parent=1 // pred_fallthru
      _
    %v23 = vld [vmem:[#allocation2] sm:$0xff]
    %v24 = vld [vmem:[#allocation2 + $0x8] sm:$0xff]
    %v25 = vadd.f32 %v23, 1.0
    %v26 = vadd.f32 %v24, 1.0
    %27 = vst [vmem:[#allocation5] sm:$0xff] %v25
    %28 = vst [vmem:[#allocation5 + $0x8] sm:$0xff] %v26
    // Predicated region
    $region10: #{tpu_custom_call.1} parent=1 // pred_check
      _
    $region11: #{tpu_custom_call.1} parent=1 // pred_check_branch
      %30 = sbr.rel (0) target = $region13
    $region12: #{tpu_custom_call.1} parent=1 // pred_region
      %32 = vsyncadd [#allocation4], 0
      %s34 = sshll.u32 [#allocation5], 4
      %s35 = int_to_ptr.vmem [resolvable:$true] %s34
      %s36 = sshll.u32 %s1, 4
      %s37 = int_to_ptr.hbm [resolvable:$true] %s36
      %39 = dma.vmem_to_hbm [thread:$0]  %s35, 256, %s37, [#allocation4]
    $region13: #{tpu_custom_call.1} parent=1 // pred_fallthru
      _
    // Predicated region
    $region14: #{tpu_custom_call.1} parent=1 // pred_check
      _
    $region15: #{tpu_custom_call.1} parent=1 // pred_check_branch
      %41 = sbr.rel (0) target = $region17
    $region16: #{tpu_custom_call.1} parent=1 // pred_region
      %43 = dma.done [#allocation4], 256
    $region17: #{tpu_custom_call.1} parent=1 // pred_fallthru
      _
    %44 = vsyncpa [#allocation3], 1
    %45 = vsyncpa [#allocation4], 1

</llo_original>
